<compile_context>
chip_gen: v7x
topology: tpu7x:2x2x1
jax: 0.10.0
libtpu: 0.0.40
codegen_flags: <defaults>
</compile_context>

<pallas_src>
import functools
import math

import jax
import jax.numpy as jnp
import numpy as np
from jax.experimental import pallas as pl
from jax.experimental.pallas import tpu as pltpu


# ----------------------------- Pallas kernel ---------------------------------
def odenet_kernel(act_ref, w_ref, vec_ref, out_ref, *, n_layers):
    """act_ref: [3, B, H]  (0: x||cond zero-padded, 1: mask zero-padded, 2: s broadcast)
       w_ref:   [L, H, H]  zero-padded per-layer weights, stored [din, dout]
       vec_ref: [L, 4, H]  per-layer rows: b, Wb, Wg, bg (zero-padded, lane-0 aligned)
       out_ref: [B, H]     lane-dense gated-MLP output (mask applied; sliced outside)"""
    xcat = act_ref[0]          # [B, H]  concat(x, cond), zero-padded to H
    mask = act_ref[1]          # [B, H]  mask, zero-padded to H
    s_b = act_ref[2]           # [B, H]  flow time s broadcast across lanes

    dx = xcat
    for l in range(n_layers):
        row = vec_ref[l]                                   # [4, H], lane-0 aligned
        b_l, wb_l, wg_l, bg_l = row[0:1], row[1:2], row[2:3], row[3:4]   # each [1, H]
        # s is [B,1] in the reference; s_b * wg == s @ Wg (outer product, bit-identical).
        gate = jax.nn.sigmoid(s_b * wg_l + bg_l)           # [B, H]  VPU+EUP, off dx chain
        sbias = s_b * wb_l                                  # [B, H]
        h = jnp.dot(dx, w_ref[l], preferred_element_type=jnp.float32) + b_l
        dx = h * gate + sbias                               # Gated_Linear.forward
        if l < n_layers - 1:
            dx = jax.nn.softplus(dx)

    out_ref[...] = dx * mask


# ------------------------------ Wrapper ---------------------------------------
@functools.partial(jax.jit, static_argnames=("n_layers", "input_dim", "cond_dim", "hidden"))
def odenet_forward(s, x, m, cond, w_slab, vec_slab, *, n_layers, input_dim, cond_dim, hidden):
    B, H = x.shape[0], hidden

    # Pack the four tiny activations into one lane-0-aligned slab -> single kernel DMA.
    xcat = jnp.zeros((B, H), jnp.float32)
    xcat = xcat.at[:, :input_dim].set(x)
    xcat = xcat.at[:, input_dim:input_dim + cond_dim].set(cond)
    m_p = jnp.zeros((B, H), jnp.float32).at[:, :input_dim].set(m)
    s_b = jnp.broadcast_to(s.astype(jnp.float32), (B, H))
    act_slab = jnp.stack([xcat, m_p, s_b])                  # [3, B, H]

    kernel = functools.partial(odenet_kernel, n_layers=n_layers)
    vmem = pl.BlockSpec(memory_space=pltpu.MemorySpace.VMEM)
    out = pl.pallas_call(
        kernel,
        out_shape=jax.ShapeDtypeStruct((B, H), jnp.float32),   # lane-dense output
        in_specs=[vmem, vmem, vmem],
        out_specs=vmem,
    )(act_slab, w_slab, vec_slab)
    return out[:, :input_dim]                               # narrow slice outside the kernel


# ---------------------- Parameter packing (done once) -------------------------
def pack_params(params, hidden):
    """Pack per-layer (W[din,dout], b, Wb, Wg, bg) into two zero-padded slabs.

    Zero padding is load-bearing: padded weight rows/cols and padded b/Wb/Wg/bg lanes
    MUST stay exactly zero, or dead lanes leak into the real output lanes."""
    H = hidden
    w_rows, vec_rows = [], []
    for (W, b, Wb, Wg, bg) in params:
        din, dout = W.shape
        assert din <= H and dout <= H, "hidden dim must dominate all layer dims"
        w_rows.append(jnp.zeros((H, H), jnp.float32).at[:din, :dout].set(W))
        vrow = jnp.zeros((4, H), jnp.float32)
        for i, v in enumerate((b, Wb, Wg, bg)):
            vrow = vrow.at[i, :dout].set(v.reshape(-1))
        vec_rows.append(vrow)
    w_slab = jnp.stack(w_rows)          # [L, H, H]
    vec_slab = jnp.stack(vec_rows)      # [L, 4, H]
    return w_slab, vec_slab


# ---------------------- Deterministic parameter init --------------------------
def init_gated_linear(key, din, dout):
    """Mimics PyTorch nn.Linear defaults. Weights stored transposed ([din, dout])."""
    ks = jax.random.split(key, 5)
    bw = 1.0 / math.sqrt(din)
    W = jax.random.uniform(ks[0], (din, dout), jnp.float32, -bw, bw)
    b = jax.random.uniform(ks[1], (1, dout), jnp.float32, -bw, bw)
    Wb = jax.random.uniform(ks[2], (1, dout), jnp.float32, -1.0, 1.0)  # Linear(1,dout,bias=False)
    Wg = jax.random.uniform(ks[3], (1, dout), jnp.float32, -1.0, 1.0)  # Linear(1,dout) weight
    bg = jax.random.uniform(ks[4], (1, dout), jnp.float32, -1.0, 1.0)  # Linear(1,dout) bias
    return (W, b, Wb, Wg, bg)


def init_odenet(key, input_dim, cond_dim, hidden_dim, hidden_layer=2):
    dims = [(input_dim + cond_dim, hidden_dim)]
    dims += [(hidden_dim, hidden_dim)] * hidden_layer
    dims += [(hidden_dim, input_dim)]
    keys = jax.random.split(key, len(dims))
    return [init_gated_linear(k, di, do) for k, (di, do) in zip(keys, dims)]


# -------------------------- Pure-JAX reference --------------------------------
def odenet_reference(s, x, m, cond, params):
    dx = jnp.concatenate([x, cond], axis=1)
    for l, (W, b, Wb, Wg, bg) in enumerate(params):
        gate = jax.nn.sigmoid(s @ Wg + bg)
        dx = (dx @ W + b) * gate + s @ Wb          # Gated_Linear.forward
        if l < len(params) - 1:
            dx = jax.nn.softplus(dx)
    return dx * m


# ------------------------------- Main ------------------------------------------
if __name__ == "__main__":
    batch = 8
    input_dim = 4
    cond_dim = 4
    hidden_dim = 32
    hidden_layer = 2

    key = jax.random.PRNGKey(0)
    kp, ks, kx, km, kc = jax.random.split(key, 5)

    params = init_odenet(kp, input_dim, cond_dim, hidden_dim, hidden_layer)
    w_slab, vec_slab = pack_params(params, hidden_dim)

    s = jax.random.uniform(ks, (batch, 1), jnp.float32)        # flow time s
    x = jax.random.normal(kx, (batch, input_dim), jnp.float32)
    m = jax.random.bernoulli(km, 0.7, (batch, input_dim)).astype(jnp.float32)
    cond = jax.random.normal(kc, (batch, cond_dim), jnp.float32)

    out = odenet_forward(s, x, m, cond, w_slab, vec_slab,
                         n_layers=len(params), input_dim=input_dim,
                         cond_dim=cond_dim, hidden=hidden_dim)
    out = jax.block_until_ready(out)

    ref = odenet_reference(s, x, m, cond, params)
    np.testing.assert_allclose(np.asarray(out), np.asarray(ref), rtol=1e-5, atol=1e-5)

    print("KERNEL_OK")
</pallas_src>

<mosaic_0001>
module attributes {stable_mosaic.version = 11 : i64} {
  func.func @odenet_kernel(%arg0: memref<3x8x32xf32, #tpu.memory_space<vmem>>, %arg1: memref<4x32x32xf32, #tpu.memory_space<vmem>>, %arg2: memref<4x4x32xf32, #tpu.memory_space<vmem>>, %arg3: memref<8x32xf32, #tpu.memory_space<vmem>>) attributes {dimension_semantics = [], scalar_prefetch = 0 : i64, scratch_operands = 0 : i64, tpu.core_type = #tpu.core_type<tc>} {
    %c0 = arith.constant 0 : index
    %c0_0 = arith.constant 0 : index
    %c0_1 = arith.constant 0 : index
    %0 = vector.load %arg0[%c0, %c0_0, %c0_1] : memref<3x8x32xf32, #tpu.memory_space<vmem>>, vector<1x8x32xf32>
    %1 = vector.shape_cast %0 : vector<1x8x32xf32> to vector<8x32xf32>
    %c1 = arith.constant 1 : index
    %c0_2 = arith.constant 0 : index
    %c0_3 = arith.constant 0 : index
    %2 = vector.load %arg0[%c1, %c0_2, %c0_3] : memref<3x8x32xf32, #tpu.memory_space<vmem>>, vector<1x8x32xf32>
    %3 = vector.shape_cast %2 : vector<1x8x32xf32> to vector<8x32xf32>
    %c2 = arith.constant 2 : index
    %c0_4 = arith.constant 0 : index
    %c0_5 = arith.constant 0 : index
    %4 = vector.load %arg0[%c2, %c0_4, %c0_5] : memref<3x8x32xf32, #tpu.memory_space<vmem>>, vector<1x8x32xf32>
    %5 = vector.shape_cast %4 : vector<1x8x32xf32> to vector<8x32xf32>
    %c0_6 = arith.constant 0 : index
    %c0_7 = arith.constant 0 : index
    %c0_8 = arith.constant 0 : index
    %6 = vector.load %arg2[%c0_6, %c0_7, %c0_8] : memref<4x4x32xf32, #tpu.memory_space<vmem>>, vector<1x4x32xf32>
    %7 = vector.shape_cast %6 : vector<1x4x32xf32> to vector<4x32xf32>
    %8 = vector.extract_strided_slice %7 {offsets = [0, 0], sizes = [1, 32], strides = [1, 1]} : vector<4x32xf32> to vector<1x32xf32>
    %9 = vector.extract_strided_slice %7 {offsets = [1, 0], sizes = [1, 32], strides = [1, 1]} : vector<4x32xf32> to vector<1x32xf32>
    %10 = vector.extract_strided_slice %7 {offsets = [2, 0], sizes = [1, 32], strides = [1, 1]} : vector<4x32xf32> to vector<1x32xf32>
    %11 = vector.extract_strided_slice %7 {offsets = [3, 0], sizes = [1, 32], strides = [1, 1]} : vector<4x32xf32> to vector<1x32xf32>
    %12 = vector.broadcast %10 : vector<1x32xf32> to vector<8x32xf32>
    %13 = arith.mulf %5, %12 : vector<8x32xf32>
    %14 = vector.broadcast %11 : vector<1x32xf32> to vector<8x32xf32>
    %15 = arith.addf %13, %14 : vector<8x32xf32>
    %16 = arith.negf %15 : vector<8x32xf32>
    %17 = math.exp %16 : vector<8x32xf32>
    %cst = arith.constant 1.000000e+00 : f32
    %18 = vector.broadcast %cst : f32 to vector<8x32xf32>
    %19 = arith.addf %18, %17 : vector<8x32xf32>
    %20 = arith.divf %18, %19 : vector<8x32xf32>
    %21 = vector.broadcast %9 : vector<1x32xf32> to vector<8x32xf32>
    %22 = arith.mulf %5, %21 : vector<8x32xf32>
    %c0_9 = arith.constant 0 : index
    %c0_10 = arith.constant 0 : index
    %c0_11 = arith.constant 0 : index
    %23 = vector.load %arg1[%c0_9, %c0_10, %c0_11] : memref<4x32x32xf32, #tpu.memory_space<vmem>>, vector<1x32x32xf32>
    %24 = vector.shape_cast %23 : vector<1x32x32xf32> to vector<32x32xf32>
    %cst_12 = arith.constant dense<0.000000e+00> : vector<8x32xf32>
    %25 = tpu.matmul %1, %24, %cst_12 {dimension_numbers = #tpu.dot_dimension_numbers<[1], [0], [0], [1], [0, 0, 1, 1], [], []>} : vector<8x32xf32>, vector<32x32xf32>, vector<8x32xf32> -> vector<8x32xf32>
    %26 = vector.broadcast %8 : vector<1x32xf32> to vector<8x32xf32>
    %27 = arith.addf %25, %26 : vector<8x32xf32>
    %28 = arith.mulf %27, %20 : vector<8x32xf32>
    %29 = arith.addf %28, %22 : vector<8x32xf32>
    %cst_13 = arith.constant 0.000000e+00 : f32
    %30 = vector.broadcast %cst_13 : f32 to vector<8x32xf32>
    %31 = arith.maximumf %29, %30 : vector<8x32xf32>
    %32 = vector.broadcast %cst_13 : f32 to vector<8x32xf32>
    %33 = arith.subf %29, %32 : vector<8x32xf32>
    %34 = arith.cmpf one, %33, %33 : vector<8x32xf32>
    %35 = vector.broadcast %cst_13 : f32 to vector<8x32xf32>
    %36 = arith.addf %29, %35 : vector<8x32xf32>
    %37 = math.absf %33 : vector<8x32xf32>
    %cst_14 = arith.constant 0.000000e+00 : f32
    %38 = vector.broadcast %cst_14 : f32 to vector<8x32xf32>
    %39 = arith.subf %38, %37 : vector<8x32xf32>
    %40 = math.exp %39 : vector<8x32xf32>
    %41 = math.log1p %40 : vector<8x32xf32>
    %42 = arith.addf %31, %41 : vector<8x32xf32>
    %43 = arith.select %34, %36, %42 : vector<8x32xi1>, vector<8x32xf32>
    %c1_15 = arith.constant 1 : index
    %c0_16 = arith.constant 0 : index
    %c0_17 = arith.constant 0 : index
    %44 = vector.load %arg2[%c1_15, %c0_16, %c0_17] : memref<4x4x32xf32, #tpu.memory_space<vmem>>, vector<1x4x32xf32>
    %45 = vector.shape_cast %44 : vector<1x4x32xf32> to vector<4x32xf32>
    %46 = vector.extract_strided_slice %45 {offsets = [0, 0], sizes = [1, 32], strides = [1, 1]} : vector<4x32xf32> to vector<1x32xf32>
    %47 = vector.extract_strided_slice %45 {offsets = [1, 0], sizes = [1, 32], strides = [1, 1]} : vector<4x32xf32> to vector<1x32xf32>
    %48 = vector.extract_strided_slice %45 {offsets = [2, 0], sizes = [1, 32], strides = [1, 1]} : vector<4x32xf32> to vector<1x32xf32>
    %49 = vector.extract_strided_slice %45 {offsets = [3, 0], sizes = [1, 32], strides = [1, 1]} : vector<4x32xf32> to vector<1x32xf32>
    %50 = vector.broadcast %48 : vector<1x32xf32> to vector<8x32xf32>
    %51 = arith.mulf %5, %50 : vector<8x32xf32>
    %52 = vector.broadcast %49 : vector<1x32xf32> to vector<8x32xf32>
    %53 = arith.addf %51, %52 : vector<8x32xf32>
    %54 = arith.negf %53 : vector<8x32xf32>
    %55 = math.exp %54 : vector<8x32xf32>
    %cst_18 = arith.constant 1.000000e+00 : f32
    %56 = vector.broadcast %cst_18 : f32 to vector<8x32xf32>
    %57 = arith.addf %56, %55 : vector<8x32xf32>
    %58 = arith.divf %56, %57 : vector<8x32xf32>
    %59 = vector.broadcast %47 : vector<1x32xf32> to vector<8x32xf32>
    %60 = arith.mulf %5, %59 : vector<8x32xf32>
    %c1_19 = arith.constant 1 : index
    %c0_20 = arith.constant 0 : index
    %c0_21 = arith.constant 0 : index
    %61 = vector.load %arg1[%c1_19, %c0_20, %c0_21] : memref<4x32x32xf32, #tpu.memory_space<vmem>>, vector<1x32x32xf32>
    %62 = vector.shape_cast %61 : vector<1x32x32xf32> to vector<32x32xf32>
    %cst_22 = arith.constant dense<0.000000e+00> : vector<8x32xf32>
    %63 = tpu.matmul %43, %62, %cst_22 {dimension_numbers = #tpu.dot_dimension_numbers<[1], [0], [0], [1], [0, 0, 1, 1], [], []>} : vector<8x32xf32>, vector<32x32xf32>, vector<8x32xf32> -> vector<8x32xf32>
    %64 = vector.broadcast %46 : vector<1x32xf32> to vector<8x32xf32>
    %65 = arith.addf %63, %64 : vector<8x32xf32>
    %66 = arith.mulf %65, %58 : vector<8x32xf32>
    %67 = arith.addf %66, %60 : vector<8x32xf32>
    %cst_23 = arith.constant 0.000000e+00 : f32
    %68 = vector.broadcast %cst_23 : f32 to vector<8x32xf32>
    %69 = arith.maximumf %67, %68 : vector<8x32xf32>
    %70 = vector.broadcast %cst_23 : f32 to vector<8x32xf32>
    %71 = arith.subf %67, %70 : vector<8x32xf32>
    %72 = arith.cmpf one, %71, %71 : vector<8x32xf32>
    %73 = vector.broadcast %cst_23 : f32 to vector<8x32xf32>
    %74 = arith.addf %67, %73 : vector<8x32xf32>
    %75 = math.absf %71 : vector<8x32xf32>
    %cst_24 = arith.constant 0.000000e+00 : f32
    %76 = vector.broadcast %cst_24 : f32 to vector<8x32xf32>
    %77 = arith.subf %76, %75 : vector<8x32xf32>
    %78 = math.exp %77 : vector<8x32xf32>
    %79 = math.log1p %78 : vector<8x32xf32>
    %80 = arith.addf %69, %79 : vector<8x32xf32>
    %81 = arith.select %72, %74, %80 : vector<8x32xi1>, vector<8x32xf32>
    %c2_25 = arith.constant 2 : index
    %c0_26 = arith.constant 0 : index
    %c0_27 = arith.constant 0 : index
    %82 = vector.load %arg2[%c2_25, %c0_26, %c0_27] : memref<4x4x32xf32, #tpu.memory_space<vmem>>, vector<1x4x32xf32>
    %83 = vector.shape_cast %82 : vector<1x4x32xf32> to vector<4x32xf32>
    %84 = vector.extract_strided_slice %83 {offsets = [0, 0], sizes = [1, 32], strides = [1, 1]} : vector<4x32xf32> to vector<1x32xf32>
    %85 = vector.extract_strided_slice %83 {offsets = [1, 0], sizes = [1, 32], strides = [1, 1]} : vector<4x32xf32> to vector<1x32xf32>
    %86 = vector.extract_strided_slice %83 {offsets = [2, 0], sizes = [1, 32], strides = [1, 1]} : vector<4x32xf32> to vector<1x32xf32>
    %87 = vector.extract_strided_slice %83 {offsets = [3, 0], sizes = [1, 32], strides = [1, 1]} : vector<4x32xf32> to vector<1x32xf32>
    %88 = vector.broadcast %86 : vector<1x32xf32> to vector<8x32xf32>
    %89 = arith.mulf %5, %88 : vector<8x32xf32>
    %90 = vector.broadcast %87 : vector<1x32xf32> to vector<8x32xf32>
    %91 = arith.addf %89, %90 : vector<8x32xf32>
    %92 = arith.negf %91 : vector<8x32xf32>
    %93 = math.exp %92 : vector<8x32xf32>
    %cst_28 = arith.constant 1.000000e+00 : f32
    %94 = vector.broadcast %cst_28 : f32 to vector<8x32xf32>
    %95 = arith.addf %94, %93 : vector<8x32xf32>
    %96 = arith.divf %94, %95 : vector<8x32xf32>
    %97 = vector.broadcast %85 : vector<1x32xf32> to vector<8x32xf32>
    %98 = arith.mulf %5, %97 : vector<8x32xf32>
    %c2_29 = arith.constant 2 : index
    %c0_30 = arith.constant 0 : index
    %c0_31 = arith.constant 0 : index
    %99 = vector.load %arg1[%c2_29, %c0_30, %c0_31] : memref<4x32x32xf32, #tpu.memory_space<vmem>>, vector<1x32x32xf32>
    %100 = vector.shape_cast %99 : vector<1x32x32xf32> to vector<32x32xf32>
    %cst_32 = arith.constant dense<0.000000e+00> : vector<8x32xf32>
    %101 = tpu.matmul %81, %100, %cst_32 {dimension_numbers = #tpu.dot_dimension_numbers<[1], [0], [0], [1], [0, 0, 1, 1], [], []>} : vector<8x32xf32>, vector<32x32xf32>, vector<8x32xf32> -> vector<8x32xf32>
    %102 = vector.broadcast %84 : vector<1x32xf32> to vector<8x32xf32>
    %103 = arith.addf %101, %102 : vector<8x32xf32>
    %104 = arith.mulf %103, %96 : vector<8x32xf32>
    %105 = arith.addf %104, %98 : vector<8x32xf32>
    %cst_33 = arith.constant 0.000000e+00 : f32
    %106 = vector.broadcast %cst_33 : f32 to vector<8x32xf32>
    %107 = arith.maximumf %105, %106 : vector<8x32xf32>
    %108 = vector.broadcast %cst_33 : f32 to vector<8x32xf32>
    %109 = arith.subf %105, %108 : vector<8x32xf32>
    %110 = arith.cmpf one, %109, %109 : vector<8x32xf32>
    %111 = vector.broadcast %cst_33 : f32 to vector<8x32xf32>
    %112 = arith.addf %105, %111 : vector<8x32xf32>
    %113 = math.absf %109 : vector<8x32xf32>
    %cst_34 = arith.constant 0.000000e+00 : f32
    %114 = vector.broadcast %cst_34 : f32 to vector<8x32xf32>
    %115 = arith.subf %114, %113 : vector<8x32xf32>
    %116 = math.exp %115 : vector<8x32xf32>
    %117 = math.log1p %116 : vector<8x32xf32>
    %118 = arith.addf %107, %117 : vector<8x32xf32>
    %119 = arith.select %110, %112, %118 : vector<8x32xi1>, vector<8x32xf32>
    %c3 = arith.constant 3 : index
    %c0_35 = arith.constant 0 : index
    %c0_36 = arith.constant 0 : index
    %120 = vector.load %arg2[%c3, %c0_35, %c0_36] : memref<4x4x32xf32, #tpu.memory_space<vmem>>, vector<1x4x32xf32>
    %121 = vector.shape_cast %120 : vector<1x4x32xf32> to vector<4x32xf32>
    %122 = vector.extract_strided_slice %121 {offsets = [0, 0], sizes = [1, 32], strides = [1, 1]} : vector<4x32xf32> to vector<1x32xf32>
    %123 = vector.extract_strided_slice %121 {offsets = [1, 0], sizes = [1, 32], strides = [1, 1]} : vector<4x32xf32> to vector<1x32xf32>
    %124 = vector.extract_strided_slice %121 {offsets = [2, 0], sizes = [1, 32], strides = [1, 1]} : vector<4x32xf32> to vector<1x32xf32>
    %125 = vector.extract_strided_slice %121 {offsets = [3, 0], sizes = [1, 32], strides = [1, 1]} : vector<4x32xf32> to vector<1x32xf32>
    %126 = vector.broadcast %124 : vector<1x32xf32> to vector<8x32xf32>
    %127 = arith.mulf %5, %126 : vector<8x32xf32>
    %128 = vector.broadcast %125 : vector<1x32xf32> to vector<8x32xf32>
    %129 = arith.addf %127, %128 : vector<8x32xf32>
    %130 = arith.negf %129 : vector<8x32xf32>
    %131 = math.exp %130 : vector<8x32xf32>
    %cst_37 = arith.constant 1.000000e+00 : f32
    %132 = vector.broadcast %cst_37 : f32 to vector<8x32xf32>
    %133 = arith.addf %132, %131 : vector<8x32xf32>
    %134 = arith.divf %132, %133 : vector<8x32xf32>
    %135 = vector.broadcast %123 : vector<1x32xf32> to vector<8x32xf32>
    %136 = arith.mulf %5, %135 : vector<8x32xf32>
    %c3_38 = arith.constant 3 : index
    %c0_39 = arith.constant 0 : index
    %c0_40 = arith.constant 0 : index
    %137 = vector.load %arg1[%c3_38, %c0_39, %c0_40] : memref<4x32x32xf32, #tpu.memory_space<vmem>>, vector<1x32x32xf32>
    %138 = vector.shape_cast %137 : vector<1x32x32xf32> to vector<32x32xf32>
    %cst_41 = arith.constant dense<0.000000e+00> : vector<8x32xf32>
    %139 = tpu.matmul %119, %138, %cst_41 {dimension_numbers = #tpu.dot_dimension_numbers<[1], [0], [0], [1], [0, 0, 1, 1], [], []>} : vector<8x32xf32>, vector<32x32xf32>, vector<8x32xf32> -> vector<8x32xf32>
    %140 = vector.broadcast %122 : vector<1x32xf32> to vector<8x32xf32>
    %141 = arith.addf %139, %140 : vector<8x32xf32>
    %142 = arith.mulf %141, %134 : vector<8x32xf32>
    %143 = arith.addf %142, %136 : vector<8x32xf32>
    %144 = arith.mulf %143, %3 : vector<8x32xf32>
    %c0_42 = arith.constant 0 : index
    %c0_43 = arith.constant 0 : index
    %145 = vector.load %arg3[%c0_42, %c0_43] : memref<8x32xf32, #tpu.memory_space<vmem>>, vector<8x32xf32>
    tpu.vector_store %arg3[%c0_42, %c0_43], %144 {strides = array<i32>} : memref<8x32xf32, #tpu.memory_space<vmem>>, vector<8x32xf32>,
    return
  }
}

</mosaic_0001>

<llo_original>
// kernel: odenet_forward.1
$region0: #{odenet_forward.1}
  #allocation0 [shape = 'u32[]', space=smem, size = 0x4, offset = 0x4, fixed_abs, tag = 'smem constant byte address 0x4 - core index']
  #allocation1 [shape = 'u32[144,128]{1,0:T(1,128)}', space=vmem, size = 0x12000, scoped, tag = 'internal scratch']
  %s0 = inlined_call_operand.vmem [shape: f32[3,8,32], index: 0, kind: input, shape index: {}]
  %s1 = inlined_call_operand.vmem [shape: f32[4,32,32], index: 1, kind: input, shape index: {}]
  %s2 = inlined_call_operand.vmem [shape: f32[4,4,32], index: 2, kind: input, shape index: {}]
  %s3 = inlined_call_operand.vmem [shape: f32[8,32], index: 3, kind: output, shape index: {}]
  %s4 = sld [smem:[#allocation0]]
  $region22: #{odenet_forward.1} parent=0
    _
  %s6 = ssub.s32 1, %s4
  %s7 = scalar_select 0, %s6, %s4
  // Predicated region
  $region2: #{odenet_forward.1} parent=0 // pred_check
    _
  $region3: #{odenet_forward.1} parent=0 // pred_check_branch
    %9 = sbr.rel (0) target = $region5
  $region4: #{odenet_forward.1} parent=0 // pred_region
    _
  $region5: #{odenet_forward.1} parent=0 // pred_fallthru
    _
  // Predicated region
  $region6: #{odenet_forward.1} parent=0 // pred_check
    _
  $region7: #{odenet_forward.1} parent=0 // pred_check_branch
    %11 = sbr.rel (0) target = $region9
  $region8: #{odenet_forward.1} parent=0 // pred_region
    _
  $region9: #{odenet_forward.1} parent=0 // pred_fallthru
    _
  // Predicated region
  $region10: #{odenet_forward.1} parent=0 // pred_check
    _
  $region11: #{odenet_forward.1} parent=0 // pred_check_branch
    %13 = sbr.rel (0) target = $region13
  $region12: #{odenet_forward.1} parent=0 // pred_region
    _
  $region13: #{odenet_forward.1} parent=0 // pred_fallthru
    _
  %v14 = vld [vmem:[%s0] sm:$0xff]
  %s15 = scalar_lea.vmem %s0, 8
  %v16 = vld [vmem:[%s15] sm:$0xff]
  %s17 = scalar_lea.vmem %s0, 16
  %v18 = vld [vmem:[%s17] sm:$0xff]
  %v19 = vld [vmem:[%s2] sm:$0xf]
  %v20 = vlaneseq
  %v21 = vshrl.u32 %v20, 7
  %v22 = vsub.s32 2, %v21
  %v23 = vrot.slane %v19, %v22
  %v24 = vmul.f32 %v18, %v23
  %v25 = vlaneseq
  %v26 = vshrl.u32 %v25, 7
  %v27 = vsub.s32 3, %v26
  %v28 = vrot.slane %v19, %v27
  %v29 = vadd.f32 %v24, %v28
  %v30 = vxor.u32 %v29, 2147483648
  %v31 = vmul.f32 %v30, 1.442695
  %v32 = vpow.pop %v31
  %v33 = vadd.f32 %v32, 1.0
  %v34 = vrcp.pop %v33
  %v35 = vmul.f32 1.0, %v34
  %v36 = vlaneseq
  %v37 = vshrl.u32 %v36, 7
  %v38 = vsub.s32 1, %v37
  %v39 = vrot.slane %v19, %v38
  %v40 = vmul.f32 %v18, %v39
  %v41 = vld [vmem:[%s1] sm:$0xff]
  %v42 = vld [vmem:[%s1 + $0x8] sm:$0xff]
  %v43 = vld [vmem:[%s1 + $0x10] sm:$0xff]
  %v44 = vld [vmem:[%s1 + $0x18] sm:$0xff]
  %v45 = vlaneseq
  %v46 = vshrl.u32 %v45, 7
  %v47 = vsub.s32 0, %v46
  %v48 = vrot.slane %v19, %v47
  %vm49 = vcmask 261120
  %v51 = vsel %vm49, %v14, 0
  %53 = vmatprep.subr.mxu0 0.0
  %54 = vmatpush1.msra.mxu0 %v41
  %55 = vmatprep.subr.mxu0 0.0
  %56 = vmatpush1.msra.mxu0 %v42
  %57 = vmatprep.subr.mxu0 0.0
  %58 = vmatpush1.msra.mxu0 %v43
  %59 = vmatprep.subr.mxu0 0.0
  %60 = vmatpush1.msra.mxu0 %v44
  %61 = vmatprep.subr.mxu0 0.0
  %62 = vmatpush1.msra.mxu0 0.0
  %63 = vmatprep.subr.mxu0 0.0
  %64 = vmatpush1.msra.mxu0 0.0
  %65 = vmatprep.subr.mxu0 0.0
  %66 = vmatpush1.msra.mxu0 0.0
  %67 = vmatprep.subr.mxu0 0.0
  %68 = vmatpush1.msra.mxu0 0.0
  %69 = vmatprep.subr.mxu0 0.0
  %70 = vmatpush1.msra.mxu0 0.0
  %71 = vmatprep.subr.mxu0 0.0
  %72 = vmatpush1.msra.mxu0 0.0
  %73 = vmatprep.subr.mxu0 0.0
  %74 = vmatpush1.msra.mxu0 0.0
  %75 = vmatprep.subr.mxu0 0.0
  %76 = vmatpush1.msra.mxu0 0.0
  %77 = vmatprep.subr.mxu0 0.0
  %78 = vmatpush1.msra.mxu0 0.0
  %79 = vmatprep.subr.mxu0 0.0
  %80 = vmatpush1.msra.mxu0 0.0
  %81 = vmatprep.subr.mxu0 0.0
  %82 = vmatpush1.msra.mxu0 0.0
  %83 = vmatprep.subr.mxu0 0.0
  %84 = vmatpush1.msra.mxu0 0.0
  %85 = vmatprep.subr.mxu0 0.0
  %86 = vmatpush1.msra.mxu0 0.0
  %87 = vmatprep.subr.mxu0 0.0
  %88 = vmatpush1.msra.mxu0 0.0
  %89 = vmatprep.subr.mxu0 0.0
  %90 = vmatpush1.msra.mxu0 0.0
  %91 = vmatprep.subr.mxu0 0.0
  %92 = vmatpush1.msra.mxu0 0.0
  %93 = vmatprep.subr.mxu0 0.0
  %94 = vmatpush1.msra.mxu0 0.0
  %95 = vmatprep.subr.mxu0 0.0
  %96 = vmatpush1.msra.mxu0 0.0
  %97 = vmatprep.subr.mxu0 0.0
  %98 = vmatpush1.msra.mxu0 0.0
  %99 = vmatprep.subr.mxu0 0.0
  %100 = vmatpush1.msra.mxu0 0.0
  %101 = vmatprep.subr.mxu0 0.0
  %102 = vmatpush1.msra.mxu0 0.0
  %103 = vmatprep.subr.mxu0 0.0
  %104 = vmatpush1.msra.mxu0 0.0
  %105 = vmatprep.subr.mxu0 0.0
  %106 = vmatpush1.msra.mxu0 0.0
  %107 = vmatprep.subr.mxu0 0.0
  %108 = vmatpush1.msra.mxu0 0.0
  %109 = vmatprep.subr.mxu0 0.0
  %110 = vmatpush1.msra.mxu0 0.0
  %111 = vmatprep.subr.mxu0 0.0
  %112 = vmatpush1.msra.mxu0 0.0
  %113 = vmatprep.subr.mxu0 0.0
  %114 = vmatpush1.msra.mxu0 0.0
  %115 = vmatprep.subr.mxu0 0.0
  %116 = vmatpush1.msra.mxu0 0.0
  %117 = vmatprep.mubr.f32.mxu0 0.0
  %118 = vmatmul.mubr.f32.gmra.mrb[0].mxu0 %v51
  %v119 = vpop.f32.mrb[0].mxu0
  %v120 = vadd.f32 %v48, %v119
  %v121 = vpop.f32.mrb[0].mxu0
  %122 = vdwg.mxu0
  %v123 = vmul.f32 %v120, %v35
  %v124 = vadd.f32 %v123, %v40
  %v125 = vmax.f32 %v124, 0.0
  %vm126 = vcmp.ne.f32.partialorder %v124, %v124
  %v127 = vadd.f32 %v124, 0.0
  %v128 = vand.u32 2147483647, %v124
  %v129 = vsub.f32 0.0, %v128
  %v130 = vmul.f32 %v129, 1.442695
  %v131 = vpow.pop %v130
  %v132 = vadd.f32 %v131, 1.0
  %v133 = vlog2.pop %v132
  %v134 = vmul.f32 %v133, 0.6931472
  %v135 = vmul.f32 -0.5, %v131
  %v136 = vadd.f32 %v135, 1.0
  %v137 = vmul.f32 %v136, %v131
  %v138 = vand.u32 2147483647, %v131
  %vm139 = vcmp.lt.f32.partialorder %v138, 0.0004427343
  %v140 = vsel %vm139, %v137, %v134
  %v141 = vadd.f32 %v125, %v140
  %v142 = vsel %vm126, %v127, %v141
  %s143 = scalar_lea.vmem %s2, 4
  %v144 = vld [vmem:[%s143] sm:$0xf]
  %v145 = vlaneseq
  %v146 = vshrl.u32 %v145, 7
  %v147 = vsub.s32 2, %v146
  %v148 = vrot.slane %v144, %v147
  %v149 = vmul.f32 %v18, %v148
  %v150 = vlaneseq
  %v151 = vshrl.u32 %v150, 7
  %v152 = vsub.s32 3, %v151
  %v153 = vrot.slane %v144, %v152
  %v154 = vadd.f32 %v149, %v153
  %v155 = vxor.u32 %v154, 2147483648
  %v156 = vmul.f32 %v155, 1.442695
  %v157 = vpow.pop %v156
  %v158 = vadd.f32 %v157, 1.0
  %v159 = vrcp.pop %v158
  %v160 = vmul.f32 1.0, %v159
  %v161 = vlaneseq
  %v162 = vshrl.u32 %v161, 7
  %v163 = vsub.s32 1, %v162
  %v164 = vrot.slane %v144, %v163
  %v165 = vmul.f32 %v18, %v164
  %s166 = scalar_lea.vmem %s1, 32
  %v167 = vld [vmem:[%s166] sm:$0xff]
  %v168 = vld [vmem:[%s166 + $0x8] sm:$0xff]
  %v169 = vld [vmem:[%s166 + $0x10] sm:$0xff]
  %v170 = vld [vmem:[%s166 + $0x18] sm:$0xff]
  %v171 = vlaneseq
  %v172 = vshrl.u32 %v171, 7
  %v173 = vsub.s32 0, %v172
  %v174 = vrot.slane %v144, %v173
  %v176 = vsel %vm49, %v142, 0
  %178 = vmatprep.subr.mxu0 0.0
  %179 = vmatpush1.msra.mxu0 %v167
  %180 = vmatprep.subr.mxu0 0.0
  %181 = vmatpush1.msra.mxu0 %v168
  %182 = vmatprep.subr.mxu0 0.0
  %183 = vmatpush1.msra.mxu0 %v169
  %184 = vmatprep.subr.mxu0 0.0
  %185 = vmatpush1.msra.mxu0 %v170
  %186 = vmatprep.subr.mxu0 0.0
  %187 = vmatpush1.msra.mxu0 0.0
  %188 = vmatprep.subr.mxu0 0.0
  %189 = vmatpush1.msra.mxu0 0.0
  %190 = vmatprep.subr.mxu0 0.0
  %191 = vmatpush1.msra.mxu0 0.0
  %192 = vmatprep.subr.mxu0 0.0
  %193 = vmatpush1.msra.mxu0 0.0
  %194 = vmatprep.subr.mxu0 0.0
  %195 = vmatpush1.msra.mxu0 0.0
  %196 = vmatprep.subr.mxu0 0.0
  %197 = vmatpush1.msra.mxu0 0.0
  %198 = vmatprep.subr.mxu0 0.0
  %199 = vmatpush1.msra.mxu0 0.0
  %200 = vmatprep.subr.mxu0 0.0
  %201 = vmatpush1.msra.mxu0 0.0
  %202 = vmatprep.subr.mxu0 0.0
  %203 = vmatpush1.msra.mxu0 0.0
  %204 = vmatprep.subr.mxu0 0.0
  %205 = vmatpush1.msra.mxu0 0.0
  %206 = vmatprep.subr.mxu0 0.0
  %207 = vmatpush1.msra.mxu0 0.0
  %208 = vmatprep.subr.mxu0 0.0
  %209 = vmatpush1.msra.mxu0 0.0
  %210 = vmatprep.subr.mxu0 0.0
  %211 = vmatpush1.msra.mxu0 0.0
  %212 = vmatprep.subr.mxu0 0.0
  %213 = vmatpush1.msra.mxu0 0.0
  %214 = vmatprep.subr.mxu0 0.0
  %215 = vmatpush1.msra.mxu0 0.0
  %216 = vmatprep.subr.mxu0 0.0
  %217 = vmatpush1.msra.mxu0 0.0
  %218 = vmatprep.subr.mxu0 0.0
  %219 = vmatpush1.msra.mxu0 0.0
  %220 = vmatprep.subr.mxu0 0.0
  %221 = vmatpush1.msra.mxu0 0.0
  %222 = vmatprep.subr.mxu0 0.0
  %223 = vmatpush1.msra.mxu0 0.0
  %224 = vmatprep.subr.mxu0 0.0
  %225 = vmatpush1.msra.mxu0 0.0
  %226 = vmatprep.subr.mxu0 0.0
  %227 = vmatpush1.msra.mxu0 0.0
  %228 = vmatprep.subr.mxu0 0.0
  %229 = vmatpush1.msra.mxu0 0.0
  %230 = vmatprep.subr.mxu0 0.0
  %231 = vmatpush1.msra.mxu0 0.0
  %232 = vmatprep.subr.mxu0 0.0
  %233 = vmatpush1.msra.mxu0 0.0
  %234 = vmatprep.subr.mxu0 0.0
  %235 = vmatpush1.msra.mxu0 0.0
  %236 = vmatprep.subr.mxu0 0.0
  %237 = vmatpush1.msra.mxu0 0.0
  %238 = vmatprep.subr.mxu0 0.0
  %239 = vmatpush1.msra.mxu0 0.0
  %240 = vmatprep.subr.mxu0 0.0
  %241 = vmatpush1.msra.mxu0 0.0
  %242 = vmatprep.mubr.f32.mxu0 0.0
  %243 = vmatmul.mubr.f32.gmra.mrb[0].mxu0 %v176
  %v244 = vpop.f32.mrb[0].mxu0
  %v245 = vadd.f32 %v174, %v244
  %v246 = vpop.f32.mrb[0].mxu0
  %247 = vdwg.mxu0
  %v248 = vmul.f32 %v245, %v160
  %v249 = vadd.f32 %v248, %v165
  %v250 = vmax.f32 %v249, 0.0
  %vm251 = vcmp.ne.f32.partialorder %v249, %v249
  %v252 = vadd.f32 %v249, 0.0
  %v253 = vand.u32 2147483647, %v249
  %v254 = vsub.f32 0.0, %v253
  %v255 = vmul.f32 %v254, 1.442695
  %v256 = vpow.pop %v255
  %v257 = vadd.f32 %v256, 1.0
  %v258 = vlog2.pop %v257
  %v259 = vmul.f32 %v258, 0.6931472
  %v260 = vmul.f32 -0.5, %v256
  %v261 = vadd.f32 %v260, 1.0
  %v262 = vmul.f32 %v261, %v256
  %v263 = vand.u32 2147483647, %v256
  %vm264 = vcmp.lt.f32.partialorder %v263, 0.0004427343
  %v265 = vsel %vm264, %v262, %v259
  %v266 = vadd.f32 %v250, %v265
  %v267 = vsel %vm251, %v252, %v266
  %s268 = scalar_lea.vmem %s2, 8
  %v269 = vld [vmem:[%s268] sm:$0xf]
  %v270 = vlaneseq
  %v271 = vshrl.u32 %v270, 7
  %v272 = vsub.s32 2, %v271
  %v273 = vrot.slane %v269, %v272
  %v274 = vmul.f32 %v18, %v273
  %v275 = vlaneseq
  %v276 = vshrl.u32 %v275, 7
  %v277 = vsub.s32 3, %v276
  %v278 = vrot.slane %v269, %v277
  %v279 = vadd.f32 %v274, %v278
  %v280 = vxor.u32 %v279, 2147483648
  %v281 = vmul.f32 %v280, 1.442695
  %v282 = vpow.pop %v281
  %v283 = vadd.f32 %v282, 1.0
  %v284 = vrcp.pop %v283
  %v285 = vmul.f32 1.0, %v284
  %v286 = vlaneseq
  %v287 = vshrl.u32 %v286, 7
  %v288 = vsub.s32 1, %v287
  %v289 = vrot.slane %v269, %v288
  %v290 = vmul.f32 %v18, %v289
  %s291 = scalar_lea.vmem %s1, 64
  %v292 = vld [vmem:[%s291] sm:$0xff]
  %v293 = vld [vmem:[%s291 + $0x8] sm:$0xff]
  %v294 = vld [vmem:[%s291 + $0x10] sm:$0xff]
  %v295 = vld [vmem:[%s291 + $0x18] sm:$0xff]
  %v296 = vlaneseq
  %v297 = vshrl.u32 %v296, 7
  %v298 = vsub.s32 0, %v297
  %v299 = vrot.slane %v269, %v298
  %v301 = vsel %vm49, %v267, 0
  %303 = vmatprep.subr.mxu0 0.0
  %304 = vmatpush1.msra.mxu0 %v292
  %305 = vmatprep.subr.mxu0 0.0
  %306 = vmatpush1.msra.mxu0 %v293
  %307 = vmatprep.subr.mxu0 0.0
  %308 = vmatpush1.msra.mxu0 %v294
  %309 = vmatprep.subr.mxu0 0.0
  %310 = vmatpush1.msra.mxu0 %v295
  %311 = vmatprep.subr.mxu0 0.0
  %312 = vmatpush1.msra.mxu0 0.0
  %313 = vmatprep.subr.mxu0 0.0
  %314 = vmatpush1.msra.mxu0 0.0
  %315 = vmatprep.subr.mxu0 0.0
  %316 = vmatpush1.msra.mxu0 0.0
  %317 = vmatprep.subr.mxu0 0.0
  %318 = vmatpush1.msra.mxu0 0.0
  %319 = vmatprep.subr.mxu0 0.0
  %320 = vmatpush1.msra.mxu0 0.0
  %321 = vmatprep.subr.mxu0 0.0
  %322 = vmatpush1.msra.mxu0 0.0
  %323 = vmatprep.subr.mxu0 0.0
  %324 = vmatpush1.msra.mxu0 0.0
  %325 = vmatprep.subr.mxu0 0.0
  %326 = vmatpush1.msra.mxu0 0.0
  %327 = vmatprep.subr.mxu0 0.0
  %328 = vmatpush1.msra.mxu0 0.0
  %329 = vmatprep.subr.mxu0 0.0
  %330 = vmatpush1.msra.mxu0 0.0
  %331 = vmatprep.subr.mxu0 0.0
  %332 = vmatpush1.msra.mxu0 0.0
  %333 = vmatprep.subr.mxu0 0.0
  %334 = vmatpush1.msra.mxu0 0.0
  %335 = vmatprep.subr.mxu0 0.0
  %336 = vmatpush1.msra.mxu0 0.0
  %337 = vmatprep.subr.mxu0 0.0
  %338 = vmatpush1.msra.mxu0 0.0
  %339 = vmatprep.subr.mxu0 0.0
  %340 = vmatpush1.msra.mxu0 0.0
  %341 = vmatprep.subr.mxu0 0.0
  %342 = vmatpush1.msra.mxu0 0.0
  %343 = vmatprep.subr.mxu0 0.0
  %344 = vmatpush1.msra.mxu0 0.0
  %345 = vmatprep.subr.mxu0 0.0
  %346 = vmatpush1.msra.mxu0 0.0
  %347 = vmatprep.subr.mxu0 0.0
  %348 = vmatpush1.msra.mxu0 0.0
  %349 = vmatprep.subr.mxu0 0.0
  %350 = vmatpush1.msra.mxu0 0.0
  %351 = vmatprep.subr.mxu0 0.0
  %352 = vmatpush1.msra.mxu0 0.0
  %353 = vmatprep.subr.mxu0 0.0
  %354 = vmatpush1.msra.mxu0 0.0
  %355 = vmatprep.subr.mxu0 0.0
  %356 = vmatpush1.msra.mxu0 0.0
  %357 = vmatprep.subr.mxu0 0.0
  %358 = vmatpush1.msra.mxu0 0.0
  %359 = vmatprep.subr.mxu0 0.0
  %360 = vmatpush1.msra.mxu0 0.0
  %361 = vmatprep.subr.mxu0 0.0
  %362 = vmatpush1.msra.mxu0 0.0
  %363 = vmatprep.subr.mxu0 0.0
  %364 = vmatpush1.msra.mxu0 0.0
  %365 = vmatprep.subr.mxu0 0.0
  %366 = vmatpush1.msra.mxu0 0.0
  %367 = vmatprep.mubr.f32.mxu0 0.0
  %368 = vmatmul.mubr.f32.gmra.mrb[0].mxu0 %v301
  %v369 = vpop.f32.mrb[0].mxu0
  %v370 = vadd.f32 %v299, %v369
  %v371 = vpop.f32.mrb[0].mxu0
  %372 = vdwg.mxu0
  %v373 = vmul.f32 %v370, %v285
  %v374 = vadd.f32 %v373, %v290
  %v375 = vmax.f32 %v374, 0.0
  %vm376 = vcmp.ne.f32.partialorder %v374, %v374
  %v377 = vadd.f32 %v374, 0.0
  %v378 = vand.u32 2147483647, %v374
  %v379 = vsub.f32 0.0, %v378
  %v380 = vmul.f32 %v379, 1.442695
  %v381 = vpow.pop %v380
  %v382 = vadd.f32 %v381, 1.0
  %v383 = vlog2.pop %v382
  %v384 = vmul.f32 %v383, 0.6931472
  %v385 = vmul.f32 -0.5, %v381
  %v386 = vadd.f32 %v385, 1.0
  %v387 = vmul.f32 %v386, %v381
  %v388 = vand.u32 2147483647, %v381
  %vm389 = vcmp.lt.f32.partialorder %v388, 0.0004427343
  %v390 = vsel %vm389, %v387, %v384
  %v391 = vadd.f32 %v375, %v390
  %v392 = vsel %vm376, %v377, %v391
  %s393 = scalar_lea.vmem %s2, 12
  %v394 = vld [vmem:[%s393] sm:$0xf]
  %v395 = vlaneseq
  %v396 = vshrl.u32 %v395, 7
  %v397 = vsub.s32 2, %v396
  %v398 = vrot.slane %v394, %v397
  %v399 = vmul.f32 %v18, %v398
  %v400 = vlaneseq
  %v401 = vshrl.u32 %v400, 7
  %v402 = vsub.s32 3, %v401
  %v403 = vrot.slane %v394, %v402
  %v404 = vadd.f32 %v399, %v403
  %v405 = vxor.u32 %v404, 2147483648
  %v406 = vmul.f32 %v405, 1.442695
  %v407 = vpow.pop %v406
  %v408 = vadd.f32 %v407, 1.0
  %v409 = vrcp.pop %v408
  %v410 = vmul.f32 1.0, %v409
  %v411 = vlaneseq
  %v412 = vshrl.u32 %v411, 7
  %v413 = vsub.s32 1, %v412
  %v414 = vrot.slane %v394, %v413
  %v415 = vmul.f32 %v18, %v414
  %s416 = scalar_lea.vmem %s1, 96
  %v417 = vld [vmem:[%s416] sm:$0xff]
  %v418 = vld [vmem:[%s416 + $0x8] sm:$0xff]
  %v419 = vld [vmem:[%s416 + $0x10] sm:$0xff]
  %v420 = vld [vmem:[%s416 + $0x18] sm:$0xff]
  %v421 = vlaneseq
  %v422 = vshrl.u32 %v421, 7
  %v423 = vsub.s32 0, %v422
  %v424 = vrot.slane %v394, %v423
  %v426 = vsel %vm49, %v392, 0
  %428 = vmatprep.subr.mxu0 0.0
  %429 = vmatpush1.msra.mxu0 %v417
  %430 = vmatprep.subr.mxu0 0.0
  %431 = vmatpush1.msra.mxu0 %v418
  %432 = vmatprep.subr.mxu0 0.0
  %433 = vmatpush1.msra.mxu0 %v419
  %434 = vmatprep.subr.mxu0 0.0
  %435 = vmatpush1.msra.mxu0 %v420
  %436 = vmatprep.subr.mxu0 0.0
  %437 = vmatpush1.msra.mxu0 0.0
  %438 = vmatprep.subr.mxu0 0.0
  %439 = vmatpush1.msra.mxu0 0.0
  %440 = vmatprep.subr.mxu0 0.0
  %441 = vmatpush1.msra.mxu0 0.0
  %442 = vmatprep.subr.mxu0 0.0
  %443 = vmatpush1.msra.mxu0 0.0
  %444 = vmatprep.subr.mxu0 0.0
  %445 = vmatpush1.msra.mxu0 0.0
  %446 = vmatprep.subr.mxu0 0.0
  %447 = vmatpush1.msra.mxu0 0.0
  %448 = vmatprep.subr.mxu0 0.0
  %449 = vmatpush1.msra.mxu0 0.0
  %450 = vmatprep.subr.mxu0 0.0
  %451 = vmatpush1.msra.mxu0 0.0
  %452 = vmatprep.subr.mxu0 0.0
  %453 = vmatpush1.msra.mxu0 0.0
  %454 = vmatprep.subr.mxu0 0.0
  %455 = vmatpush1.msra.mxu0 0.0
  %456 = vmatprep.subr.mxu0 0.0
  %457 = vmatpush1.msra.mxu0 0.0
  %458 = vmatprep.subr.mxu0 0.0
  %459 = vmatpush1.msra.mxu0 0.0
  %460 = vmatprep.subr.mxu0 0.0
  %461 = vmatpush1.msra.mxu0 0.0
  %462 = vmatprep.subr.mxu0 0.0
  %463 = vmatpush1.msra.mxu0 0.0
  %464 = vmatprep.subr.mxu0 0.0
  %465 = vmatpush1.msra.mxu0 0.0
  %466 = vmatprep.subr.mxu0 0.0
  %467 = vmatpush1.msra.mxu0 0.0
  %468 = vmatprep.subr.mxu0 0.0
  %469 = vmatpush1.msra.mxu0 0.0
  %470 = vmatprep.subr.mxu0 0.0
  %471 = vmatpush1.msra.mxu0 0.0
  %472 = vmatprep.subr.mxu0 0.0
  %473 = vmatpush1.msra.mxu0 0.0
  %474 = vmatprep.subr.mxu0 0.0
  %475 = vmatpush1.msra.mxu0 0.0
  %476 = vmatprep.subr.mxu0 0.0
  %477 = vmatpush1.msra.mxu0 0.0
  %478 = vmatprep.subr.mxu0 0.0
  %479 = vmatpush1.msra.mxu0 0.0
  %480 = vmatprep.subr.mxu0 0.0
  %481 = vmatpush1.msra.mxu0 0.0
  %482 = vmatprep.subr.mxu0 0.0
  %483 = vmatpush1.msra.mxu0 0.0
  %484 = vmatprep.subr.mxu0 0.0
  %485 = vmatpush1.msra.mxu0 0.0
  %486 = vmatprep.subr.mxu0 0.0
  %487 = vmatpush1.msra.mxu0 0.0
  %488 = vmatprep.subr.mxu0 0.0
  %489 = vmatpush1.msra.mxu0 0.0
  %490 = vmatprep.subr.mxu0 0.0
  %491 = vmatpush1.msra.mxu0 0.0
  %492 = vmatprep.mubr.f32.mxu0 0.0
  %493 = vmatmul.mubr.f32.gmra.mrb[0].mxu0 %v426
  %v494 = vpop.f32.mrb[0].mxu0
  %v495 = vadd.f32 %v424, %v494
  %v496 = vpop.f32.mrb[0].mxu0
  %497 = vdwg.mxu0
  %v498 = vmul.f32 %v495, %v410
  %v499 = vadd.f32 %v498, %v415
  %v500 = vmul.f32 %v499, %v16
  %501 = vst.msk [vmem:[%s3] sm:$0xff] %vm49, %v500
  // Predicated region
  $region14: #{odenet_forward.1} parent=0 // pred_check
    _
  $region15: #{odenet_forward.1} parent=0 // pred_check_branch
    %503 = sbr.rel (0) target = $region17
  $region16: #{odenet_forward.1} parent=0 // pred_region
    _
  $region17: #{odenet_forward.1} parent=0 // pred_fallthru
    _
  // Predicated region
  $region18: #{odenet_forward.1} parent=0 // pred_check
    _
  $region19: #{odenet_forward.1} parent=0 // pred_check_branch
    %505 = sbr.rel (0) target = $region21
  $region20: #{odenet_forward.1} parent=0 // pred_region
    _
  $region21: #{odenet_forward.1} parent=0 // pred_fallthru
    _

</llo_original>
